<compile_context>
chip_gen: v7x
topology: tpu7x:2x2x1
jax: 0.10.0
libtpu: 0.0.40
codegen_flags: <defaults>
</compile_context>

<pallas_src>
import jax
import jax.numpy as jnp
from jax.experimental import pallas as pl
from jax.experimental.pallas import tpu as pltpu


def _make_residual_kernel(c: int):
    def _kernel(x_ref, wt_ref, b_ref, o_ref):
        # x_ref / o_ref: (1, C, THW) VMEM blocks (THW lane-dense).
        # wt_ref: (C_out, C_in) VMEM (transposed conv weight).
        # b_ref:  (C, 1) VMEM.
        x = x_ref[0].astype(jnp.float32)                  # (C, THW)
        acc = x + b_ref[...]                              # residual + bias (lane bcast)
        for ci in range(c):                               # static unroll, C small
            # (C,1) column of weights  x  (1,THW) input row  ->  (C,THW) FMA on VPU
            acc = acc + wt_ref[:, ci:ci + 1] * x[ci:ci + 1, :]
        o_ref[0] = acc.astype(o_ref.dtype)                # single lane-dense store
    return _kernel


def residual_forward(x_nchw, w, b):
    """Computes fn(x) + x with fn = 1x1 conv (w: (C_in, C_out), b: (1, C) or (C,))."""
    n, c, h, wd = x_nchw.shape
    hw = h * wd
    x3d = x_nchw.reshape(n, c, hw)                 # free reshape, no transpose
    wt = jnp.asarray(w, jnp.float32).T             # (C_out, C_in)
    b_col = jnp.asarray(b, jnp.float32).reshape(c, 1)

    itemsize = jnp.dtype(x3d.dtype).itemsize
    if hw % 128 == 0:
        # Lane-dense spatial tile; cap each block around ~1 MiB so the
        # double-buffered in+out footprint stays small on every generation.
        max_thw = max(128, ((1 << 20) // (c * itemsize)) // 128 * 128)
        thw = min(hw, max_thw)
    else:
        thw = hw                                   # full-extent last dim is always legal
    grid = (n, pl.cdiv(hw, thw))

    block_bytes = c * thw * itemsize
    vmem_limit = int(min(32 * 1024 * 1024, max(4 * 1024 * 1024, 8 * block_bytes)))

    out3d = pl.pallas_call(
        _make_residual_kernel(c),
        out_shape=jax.ShapeDtypeStruct((n, c, hw), x3d.dtype),
        grid=grid,
        in_specs=[
            pl.BlockSpec((1, c, thw), lambda i, j: (i, 0, j)),
            pl.BlockSpec(memory_space=pltpu.MemorySpace.VMEM),   # wT, whole (C,C)
            pl.BlockSpec(memory_space=pltpu.MemorySpace.VMEM),   # b,  whole (C,1)
        ],
        out_specs=pl.BlockSpec((1, c, thw), lambda i, j: (i, 0, j)),
        compiler_params=pltpu.CompilerParams(
            dimension_semantics=("parallel", "parallel"),
            vmem_limit_bytes=vmem_limit,
        ),
    )(x3d, wt, b_col)

    return out3d.reshape(n, c, h, wd)


if __name__ == "__main__":
    key = jax.random.PRNGKey(0)
    kx, kw, kb = jax.random.split(key, 3)

    N, C, H, W = 2, 4, 16, 16
    x = jax.random.normal(kx, (N, C, H, W), dtype=jnp.float32)

    # Deterministic synthetic parameters for fn (1x1 conv: C -> C),
    # stored as w[c_in, c_out] ("x @ w" convention) and bias (1, C).
    w = jax.random.normal(kw, (C, C), dtype=jnp.float32) * 0.1
    b = jax.random.normal(kb, (1, C), dtype=jnp.float32) * 0.1

    out = residual_forward(x, w, b)
    jax.block_until_ready(out)

    # Pure-JAX reference of fn(x) + x.
    ref = jnp.einsum('io,nihw->nohw', w, x) + b.reshape(1, C, 1, 1) + x
    assert out.shape == x.shape and out.dtype == x.dtype
    assert jnp.allclose(out, ref, atol=1e-5, rtol=1e-5), "mismatch vs reference"

    print("KERNEL_OK")
</pallas_src>

<mosaic_0001>
module attributes {stable_mosaic.version = 11 : i64} {
  func.func @_kernel(%arg0: i32, %arg1: i32, %arg2: memref<1x4x256xf32, #tpu.memory_space<vmem>>, %arg3: memref<4x4xf32, #tpu.memory_space<vmem>>, %arg4: memref<4x1xf32, #tpu.memory_space<vmem>>, %arg5: memref<1x4x256xf32, #tpu.memory_space<vmem>>) attributes {dimension_semantics = [#tpu.dimension_semantics<parallel>, #tpu.dimension_semantics<parallel>], iteration_bounds = array<i64: 2, 1>, scalar_prefetch = 0 : i64, scratch_operands = 0 : i64, tpu.core_type = #tpu.core_type<tc>, window_params = [{transform_indices = @transform_0, window_bounds = array<i64: 1, 4, 256>}, {pipeline_mode = #tpu.pipeline_mode<synchronous>, transform_indices = @transform_1, window_bounds = array<i64: 4, 4>}, {pipeline_mode = #tpu.pipeline_mode<synchronous>, transform_indices = @transform_2, window_bounds = array<i64: 4, 1>}, {transform_indices = @transform_3, window_bounds = array<i64: 1, 4, 256>}]} {
    %c0 = arith.constant 0 : index
    %c0_0 = arith.constant 0 : index
    %c0_1 = arith.constant 0 : index
    %0 = vector.load %arg2[%c0, %c0_0, %c0_1] : memref<1x4x256xf32, #tpu.memory_space<vmem>>, vector<1x4x256xf32>
    %1 = vector.shape_cast %0 : vector<1x4x256xf32> to vector<4x256xf32>
    %c0_2 = arith.constant 0 : index
    %c0_3 = arith.constant 0 : index
    %2 = vector.load %arg4[%c0_2, %c0_3] : memref<4x1xf32, #tpu.memory_space<vmem>>, vector<4x1xf32>
    %3 = vector.broadcast %2 : vector<4x1xf32> to vector<4x256xf32>
    %4 = arith.addf %1, %3 : vector<4x256xf32>
    %c0_4 = arith.constant 0 : index
    %c0_5 = arith.constant 0 : index
    %5 = vector.load %arg3[%c0_4, %c0_5] : memref<4x4xf32, #tpu.memory_space<vmem>>, vector<4x1xf32>
    %6 = vector.extract_strided_slice %1 {offsets = [0, 0], sizes = [1, 256], strides = [1, 1]} : vector<4x256xf32> to vector<1x256xf32>
    %7 = vector.broadcast %5 : vector<4x1xf32> to vector<4x256xf32>
    %8 = vector.broadcast %6 : vector<1x256xf32> to vector<4x256xf32>
    %9 = arith.mulf %7, %8 : vector<4x256xf32>
    %10 = arith.addf %4, %9 : vector<4x256xf32>
    %c0_6 = arith.constant 0 : index
    %c1 = arith.constant 1 : index
    %11 = vector.load %arg3[%c0_6, %c1] : memref<4x4xf32, #tpu.memory_space<vmem>>, vector<4x1xf32>
    %12 = vector.extract_strided_slice %1 {offsets = [1, 0], sizes = [1, 256], strides = [1, 1]} : vector<4x256xf32> to vector<1x256xf32>
    %13 = vector.broadcast %11 : vector<4x1xf32> to vector<4x256xf32>
    %14 = vector.broadcast %12 : vector<1x256xf32> to vector<4x256xf32>
    %15 = arith.mulf %13, %14 : vector<4x256xf32>
    %16 = arith.addf %10, %15 : vector<4x256xf32>
    %c0_7 = arith.constant 0 : index
    %c2 = arith.constant 2 : index
    %17 = vector.load %arg3[%c0_7, %c2] : memref<4x4xf32, #tpu.memory_space<vmem>>, vector<4x1xf32>
    %18 = vector.extract_strided_slice %1 {offsets = [2, 0], sizes = [1, 256], strides = [1, 1]} : vector<4x256xf32> to vector<1x256xf32>
    %19 = vector.broadcast %17 : vector<4x1xf32> to vector<4x256xf32>
    %20 = vector.broadcast %18 : vector<1x256xf32> to vector<4x256xf32>
    %21 = arith.mulf %19, %20 : vector<4x256xf32>
    %22 = arith.addf %16, %21 : vector<4x256xf32>
    %c0_8 = arith.constant 0 : index
    %c3 = arith.constant 3 : index
    %23 = vector.load %arg3[%c0_8, %c3] : memref<4x4xf32, #tpu.memory_space<vmem>>, vector<4x1xf32>
    %24 = vector.extract_strided_slice %1 {offsets = [3, 0], sizes = [1, 256], strides = [1, 1]} : vector<4x256xf32> to vector<1x256xf32>
    %25 = vector.broadcast %23 : vector<4x1xf32> to vector<4x256xf32>
    %26 = vector.broadcast %24 : vector<1x256xf32> to vector<4x256xf32>
    %27 = arith.mulf %25, %26 : vector<4x256xf32>
    %28 = arith.addf %22, %27 : vector<4x256xf32>
    %c0_9 = arith.constant 0 : index
    %c0_10 = arith.constant 0 : index
    %c0_11 = arith.constant 0 : index
    %29 = vector.load %arg5[%c0_9, %c0_10, %c0_11] : memref<1x4x256xf32, #tpu.memory_space<vmem>>, vector<1x4x256xf32>
    %30 = vector.shape_cast %29 : vector<1x4x256xf32> to vector<4x256xf32>
    %31 = vector.shape_cast %28 : vector<4x256xf32> to vector<1x4x256xf32>
    tpu.vector_store %arg5[%c0_9, %c0_10, %c0_11], %31 {strides = array<i32>} : memref<1x4x256xf32, #tpu.memory_space<vmem>>, vector<1x4x256xf32>,
    return
  }
  func.func @transform_0(%arg0: i32, %arg1: i32) -> (i32, i32, i32) {
    %c0_i32 = arith.constant 0 : i32
    %c0_i32_0 = arith.constant 0 : i32
    return %arg0, %c0_i32, %arg1 : i32, i32, i32
  }
  func.func @transform_1(%arg0: i32, %arg1: i32) -> (i32, i32) {
    %c0_i32 = arith.constant 0 : i32
    %c0_i32_0 = arith.constant 0 : i32
    %c0_i32_1 = arith.constant 0 : i32
    return %c0_i32, %c0_i32_0 : i32, i32
  }
  func.func @transform_2(%arg0: i32, %arg1: i32) -> (i32, i32) {
    %c0_i32 = arith.constant 0 : i32
    %c0_i32_0 = arith.constant 0 : i32
    %c0_i32_1 = arith.constant 0 : i32
    return %c0_i32, %c0_i32_0 : i32, i32
  }
  func.func @transform_3(%arg0: i32, %arg1: i32) -> (i32, i32, i32) {
    %c0_i32 = arith.constant 0 : i32
    %c0_i32_0 = arith.constant 0 : i32
    return %arg0, %c0_i32, %arg1 : i32, i32, i32
  }
}

</mosaic_0001>

<llo_original>
// kernel: tpu_custom_call.1
$region0: #{tpu_custom_call.1}
  #allocation0 [shape = 'u32[]', space=smem, size = 0x4, offset = 0x4, fixed_abs, tag = 'smem constant byte address 0x4 - core index']
  #allocation1 [shape = 'u32[144,128]{1,0:T(1,128)}', space=vmem, size = 0x12000, scoped, tag = 'internal scratch']
  %s0 = inlined_call_operand.hbm [shape: f32[2,4,256], index: 0, kind: input, shape index: {}]
  %s1 = inlined_call_operand.vmem [shape: f32[4,4], index: 1, kind: input, shape index: {}]
  %s2 = inlined_call_operand.vmem [shape: f32[4,1], index: 2, kind: input, shape index: {}]
  %s3 = inlined_call_operand.hbm [shape: f32[2,4,256], index: 3, kind: output, shape index: {}]
  %s4 = sld [smem:[#allocation0]]
  $region49: #{tpu_custom_call.1} parent=0
    _
  %s6 = ssub.s32 1, %s4
  %s7 = scalar_select 0, %s6, %s4
  $region1: #{tpu_custom_call.1} parent=0
    #allocation2 [shape = 'u8[8192]{0}', space=vmem, size = 0x2000, scoped, tag = 'input window, operand 0']
    #allocation3 [shape = 's32[2]{0}', space=sflag, size = 0x8, scoped, tag = 'scoped memory for tpu_custom_call.1']
    #allocation4 [shape = 's32[2]{0}', space=sflag, size = 0x8, scoped, tag = 'scoped memory for tpu_custom_call.1']
    #allocation5 [shape = 'u8[8192]{0}', space=vmem, size = 0x2000, scoped, tag = 'output window, operand 0']
    %8 = vsyncpa [#allocation3], 0
    %s9 = scalar_lea.sflag [#allocation3], 1
    %10 = vsyncpa %s9, 0
    %11 = vsyncpa [#allocation4], 0
    %s12 = scalar_lea.sflag [#allocation4], 1
    %13 = vsyncpa %s12, 0
    loop: start=0, step=1, limit=4
    $region2: #{tpu_custom_call.1} parent=1 // loop_pre_header
      _
    $region3: #{tpu_custom_call.1} parent=1 // loop_header
      %s15 = sphi 0, %s19
      %p16 = scmp.ge.s32.totalorder %s15, 4
      %s22 = sphi 0, %s34
      %s23 = sphi 0, %s30
      %s24 = sphi 0, %s22
      %s25 = sphi 0, %s23
      %s26 = sphi 0, %s24
      %s27 = sphi 0, %s25
      %s39 = sphi 0, %s41
      %s42 = sphi 0, %s39
      %s43 = sphi 0, %s42
      %s59 = sphi 0, %s43
      %s63 = sphi 0, %s63
      %s65 = sphi 0, %s63
      %s66 = sphi 0, %s65
      %s80 = sphi 0, %s66
      %s84 = sphi 0, %s84
      %s86 = sphi 0, %s84
      %s87 = sphi 0, %s86
      %s101 = sphi 0, %s87
      %s109 = sphi 0, %s111
      %s112 = sphi 0, %s109
      %s113 = sphi 0, %s112
      %s129 = sphi 0, %s113
    $region4: #{tpu_custom_call.1} parent=1 // loop_header_branch
      %18 = sbr.rel (%p16) target = $region8
    $region5: #{tpu_custom_call.1} parent=1 // loop_body
      %s20 = ssub.s32 %s15, 1
      %s21 = ssub.s32 %s15, 2
      %s28 = sadd.s32 1, %s23
      %p29 = scmp.ge.s32.totalorder %s28, 1
      %s30 = scalar_select %p29, 0, %s28
      %s31 = sadd.s32 1, %s22
      %s32 = scalar_select %p29, %s31, %s22
      %p33 = scmp.ge.s32.totalorder %s32, 2
      %s34 = scalar_select %p33, 0, %s32
      %s35 = ssub.s32 %s22, %s34
      %s36 = ssub.s32 %s23, %s30
      %s37 = sor.u32 %s35, %s36
      %p38 = scmp.eq.s32.totalorder %s37, 0
      %s40 = sadd.s32 %s39, 1
      %s41 = scalar_select %p38, %s39, %s40
      %p44 = pneg %p38
      %p45 = scmp.eq.s32.totalorder %s15, 1
      %p46 = por %p44, %p45
      %p47 = scmp.ne.s32.totalorder %s39, %s42
      %p48 = scmp.eq.s32.totalorder %s15, 0
      %p49 = por %p47, %p48
      %p50 = scmp.ne.s32.totalorder %s39, %s42
      %p51 = scmp.eq.s32.totalorder %s20, 1
      %p52 = por %p50, %p51
      %p53 = scmp.ne.s32.totalorder %s42, %s43
      %p54 = scmp.eq.s32.totalorder %s20, 0
      %p55 = por %p53, %p54
      %p56 = scmp.ne.s32.totalorder %s42, %s43
      %p57 = scmp.eq.s32.totalorder %s21, 1
      %p58 = por %p56, %p57
      %p60 = scmp.ne.s32.totalorder %s43, %s59
      %p61 = scmp.eq.s32.totalorder %s21, 0
      %p62 = por %p60, %p61
      %s64 = sadd.s32 %s63, 1
      %p67 = scmp.eq.s32.totalorder %s15, 1
      %p68 = scmp.ne.s32.totalorder %s63, %s65
      %p69 = scmp.eq.s32.totalorder %s15, 0
      %p70 = por %p68, %p69
      %p71 = scmp.ne.s32.totalorder %s63, %s65
      %p72 = scmp.eq.s32.totalorder %s20, 1
      %p73 = por %p71, %p72
      %p74 = scmp.ne.s32.totalorder %s65, %s66
      %p75 = scmp.eq.s32.totalorder %s20, 0
      %p76 = por %p74, %p75
      %p77 = scmp.ne.s32.totalorder %s65, %s66
      %p78 = scmp.eq.s32.totalorder %s21, 1
      %p79 = por %p77, %p78
      %p81 = scmp.ne.s32.totalorder %s66, %s80
      %p82 = scmp.eq.s32.totalorder %s21, 0
      %p83 = por %p81, %p82
      %s85 = sadd.s32 %s84, 1
      %p88 = scmp.eq.s32.totalorder %s15, 1
      %p89 = scmp.ne.s32.totalorder %s84, %s86
      %p90 = scmp.eq.s32.totalorder %s15, 0
      %p91 = por %p89, %p90
      %p92 = scmp.ne.s32.totalorder %s84, %s86
      %p93 = scmp.eq.s32.totalorder %s20, 1
      %p94 = por %p92, %p93
      %p95 = scmp.ne.s32.totalorder %s86, %s87
      %p96 = scmp.eq.s32.totalorder %s20, 0
      %p97 = por %p95, %p96
      %p98 = scmp.ne.s32.totalorder %s86, %s87
      %p99 = scmp.eq.s32.totalorder %s21, 1
      %p100 = por %p98, %p99
      %p102 = scmp.ne.s32.totalorder %s87, %s101
      %p103 = scmp.eq.s32.totalorder %s21, 0
      %p104 = por %p102, %p103
      %s105 = ssub.s32 %s22, %s34
      %s106 = ssub.s32 %s23, %s30
      %s107 = sor.u32 %s105, %s106
      %p108 = scmp.eq.s32.totalorder %s107, 0
      %s110 = sadd.s32 %s109, 1
      %s111 = scalar_select %p108, %s109, %s110
      %p114 = pneg %p108
      %p115 = scmp.eq.s32.totalorder %s15, 1
      %p116 = por %p114, %p115
      %p117 = scmp.ne.s32.totalorder %s109, %s112
      %p118 = scmp.eq.s32.totalorder %s15, 0
      %p119 = por %p117, %p118
      %p120 = scmp.ne.s32.totalorder %s109, %s112
      %p121 = scmp.eq.s32.totalorder %s20, 1
      %p122 = por %p120, %p121
      %p123 = scmp.ne.s32.totalorder %s112, %s113
      %p124 = scmp.eq.s32.totalorder %s20, 0
      %p125 = por %p123, %p124
      %p126 = scmp.ne.s32.totalorder %s112, %s113
      %p127 = scmp.eq.s32.totalorder %s21, 1
      %p128 = por %p126, %p127
      %p130 = scmp.ne.s32.totalorder %s113, %s129
      %p131 = scmp.eq.s32.totalorder %s21, 0
      %p132 = por %p130, %p131
      %p133 = scmp.le.s32.totalorder 1, %s15
      %p134 = scmp.lt.s32.totalorder %s15, 3
      %p135 = pnand %p133, %p134
      %p136 = pneg %p135
      // Predicated region
      $region9: #{tpu_custom_call.1} parent=5 // pred_check
        _
      $region10: #{tpu_custom_call.1} parent=5 // pred_check_branch
        %138 = sbr.rel (%p135) target = $region12
      $region11: #{tpu_custom_call.1} parent=5 // pred_region
        %s139 = ssub.s32 %s15, 1
        // Predicated region
        $region13: #{tpu_custom_call.1} parent=11 // pred_check
          %p140 = pneg %p76
        $region14: #{tpu_custom_call.1} parent=11 // pred_check_branch
          %142 = sbr.rel (%p140) target = $region16
        $region15: #{tpu_custom_call.1} parent=11 // pred_region
          _
        $region16: #{tpu_custom_call.1} parent=11 // pred_fallthru
          _
        // Predicated region
        $region17: #{tpu_custom_call.1} parent=11 // pred_check
          %p143 = pneg %p97
        $region18: #{tpu_custom_call.1} parent=11 // pred_check_branch
          %145 = sbr.rel (%p143) target = $region20
        $region19: #{tpu_custom_call.1} parent=11 // pred_region
          _
        $region20: #{tpu_custom_call.1} parent=11 // pred_fallthru
          _
      $region12: #{tpu_custom_call.1} parent=5 // pred_fallthru
        _
      %p146 = scmp.lt.s32.totalorder %s15, 2
      // Predicated region
      $region21: #{tpu_custom_call.1} parent=5 // pred_check
        %p147 = pneg %p146
      $region22: #{tpu_custom_call.1} parent=5 // pred_check_branch
        %149 = sbr.rel (%p147) target = $region24
      $region23: #{tpu_custom_call.1} parent=5 // pred_region
        // Predicated region
        $region25: #{tpu_custom_call.1} parent=23 // pred_check
          %p150 = pneg %p49
        $region26: #{tpu_custom_call.1} parent=23 // pred_check_branch
          %152 = sbr.rel (%p150) target = $region28
        $region27: #{tpu_custom_call.1} parent=23 // pred_region
          %s153 = sand.u32 %s39, 1
          %s154 = scalar_lea.sflag [#allocation3], %s153
          %s155 = sand.u32 %s39, 1
          %s156 = smul.addr %s155, 8
          %s157 = scalar_lea.vmem [#allocation2], %s156
          %s158 = smul.u32 2, %s23
          %s160 = ssub.s32 128, 128
          %161 = vsyncadd %s154, %s160
          %s162 = smul.addr %s22, 2
          %s163 = sadd.s32 %s158, %s162
          %s164 = smul.addr %s163, 64
          %s165 = scalar_lea.hbm %s0, %s164
          %s167 = sshll.u32 %s157, 4
          %s168 = int_to_ptr.vmem [resolvable:$true] %s167
          %170 = dma.hbm_to_vmem [thread:$0]  %s165, 128, %s168, %s154
        $region28: #{tpu_custom_call.1} parent=23 // pred_fallthru
          _
      $region24: #{tpu_custom_call.1} parent=5 // pred_fallthru
        _
      %p171 = scmp.le.s32.totalorder 1, %s15
      %p172 = scmp.lt.s32.totalorder %s15, 3
      %p173 = pnand %p171, %p172
      %p174 = pneg %p173
      // Predicated region
      $region29: #{tpu_custom_call.1} parent=5 // pred_check
        _
      $region30: #{tpu_custom_call.1} parent=5 // pred_check_branch
        %176 = sbr.rel (%p173) target = $region32
      $region31: #{tpu_custom_call.1} parent=5 // pred_region
        %s177 = ssub.s32 %s15, 1
        %s178 = sand.u32 %s42, 1
        %s179 = scalar_lea.sflag [#allocation3], %s178
        %s180 = sand.u32 %s42, 1
        %s181 = smul.addr %s180, 8
        %s182 = scalar_lea.vmem [#allocation2], %s181
        // Predicated region
        $region33: #{tpu_custom_call.1} parent=31 // pred_check
          %p183 = pneg %p55
        $region34: #{tpu_custom_call.1} parent=31 // pred_check_branch
          %185 = sbr.rel (%p183) target = $region36
        $region35: #{tpu_custom_call.1} parent=31 // pred_region
          %186 = dma.done %s179, 128
        $region36: #{tpu_custom_call.1} parent=31 // pred_fallthru
          _
        %s187 = sand.u32 %s42, 1
        %s188 = scalar_lea.sflag [#allocation3], %s187
        %s189 = sand.u32 %s42, 1
        %s190 = smul.addr %s189, 8
        %s191 = scalar_lea.vmem [#allocation2], %s190
        %p192 = pneg %p55
        %p193 = pneg %p52
        %p194 = pneg %p76
        %p195 = pneg %p73
        %p196 = pneg %p97
        %p197 = pneg %p94
        %p198 = pneg %p125
        %p199 = pneg %p122
        %s200 = sand.u32 %s112, 1
        %s201 = scalar_lea.sflag [#allocation4], %s200
        %s202 = sand.u32 %s112, 1
        %s203 = smul.addr %s202, 8
        %s204 = scalar_lea.vmem [#allocation5], %s203
        %s205 = smul.u32 2, %s25
        %s206 = smul.u32 2, %s25
        %v207 = vld [vmem:[%s182] sm:$0xff]
        %v208 = vld [vmem:[%s2] sm:$0xf]
        %210 = vset.pattern.permute.xlu0 0
        %211 = vperm.xlu0 %210, %v208
        %v212 = vpop.permute.xlu0 %211
        %v214 = vunpack.c.l.s4 839922192
        %v215 = vunpack.c.0.s8 %v214
        %v216 = vlaneseq
        %v217 = vshrl.u32 %v216, 7
        %v218 = vsub.s32 %v215, %v217
        %v219 = vrot.slane %v212, %v218
        %v221 = vadd.f32 %v207, %v219
        %v222 = vld [vmem:[%s1] sm:$0xf]
        %224 = vset.pattern.permute.xlu0 0
        %225 = vperm.xlu0 %224, %v222
        %v226 = vpop.permute.xlu0 %225
        %v229 = vlaneseq
        %v230 = vshrl.u32 %v229, 7
        %v231 = vsub.s32 0, %v230
        %v232 = vrot.slane %v207, %v231
        %v233 = vlaneseq
        %v234 = vshrl.u32 %v233, 7
        %v235 = vsub.s32 4, %v234
        %v236 = vrot.slane %v207, %v235
        %v239 = vlaneseq
        %v240 = vshrl.u32 %v239, 7
        %v241 = vsub.s32 0, %v240
        %v242 = vrot.slane %v232, %v241
        %v243 = vlaneseq
        %v244 = vshrl.u32 %v243, 7
        %v245 = vsub.s32 0, %v244
        %v246 = vrot.slane %v236, %v245
        %v247 = vmul.f32 %v226, %v242
        %v248 = vmul.f32 %v226, %v246
        %v251 = vcombine.low %v247, %v248
        %v253 = vadd.f32 %v221, %v251
        %v254 = vld [vmem:[%s1] sm:$0xf]
        %256 = vset.pattern.permute.xlu0 1
        %257 = vperm.xlu0 %256, %v254
        %v258 = vpop.permute.xlu0 %257
        %v260 = vlaneseq
        %v261 = vshrl.u32 %v260, 7
        %v262 = vsub.s32 1, %v261
        %v263 = vrot.slane %v207, %v262
        %v264 = vlaneseq
        %v265 = vshrl.u32 %v264, 7
        %v266 = vsub.s32 5, %v265
        %v267 = vrot.slane %v207, %v266
        %v270 = vlaneseq
        %v271 = vshrl.u32 %v270, 7
        %v272 = vsub.s32 1, %v271
        %v273 = vrot.slane %v263, %v272
        %v274 = vlaneseq
        %v275 = vshrl.u32 %v274, 7
        %v276 = vsub.s32 1, %v275
        %v277 = vrot.slane %v267, %v276
        %v278 = vmul.f32 %v258, %v273
        %v279 = vmul.f32 %v258, %v277
        %v282 = vcombine.low %v278, %v279
        %v284 = vadd.f32 %v253, %v282
        %v285 = vld [vmem:[%s1] sm:$0xf]
        %287 = vset.pattern.permute.xlu0 2
        %288 = vperm.xlu0 %287, %v285
        %v289 = vpop.permute.xlu0 %288
        %v291 = vlaneseq
        %v292 = vshrl.u32 %v291, 7
        %v293 = vsub.s32 2, %v292
        %v294 = vrot.slane %v207, %v293
        %v295 = vlaneseq
        %v296 = vshrl.u32 %v295, 7
        %v297 = vsub.s32 6, %v296
        %v298 = vrot.slane %v207, %v297
        %v301 = vlaneseq
        %v302 = vshrl.u32 %v301, 7
        %v303 = vsub.s32 2, %v302
        %v304 = vrot.slane %v294, %v303
        %v305 = vlaneseq
        %v306 = vshrl.u32 %v305, 7
        %v307 = vsub.s32 2, %v306
        %v308 = vrot.slane %v298, %v307
        %v309 = vmul.f32 %v289, %v304
        %v310 = vmul.f32 %v289, %v308
        %v313 = vcombine.low %v309, %v310
        %v315 = vadd.f32 %v284, %v313
        %v316 = vld [vmem:[%s1] sm:$0xf]
        %318 = vset.pattern.permute.xlu0 3
        %319 = vperm.xlu0 %318, %v316
        %v320 = vpop.permute.xlu0 %319
        %v322 = vlaneseq
        %v323 = vshrl.u32 %v322, 7
        %v324 = vsub.s32 3, %v323
        %v325 = vrot.slane %v207, %v324
        %v326 = vlaneseq
        %v327 = vshrl.u32 %v326, 7
        %v328 = vsub.s32 7, %v327
        %v329 = vrot.slane %v207, %v328
        %v332 = vlaneseq
        %v333 = vshrl.u32 %v332, 7
        %v334 = vsub.s32 3, %v333
        %v335 = vrot.slane %v325, %v334
        %v336 = vlaneseq
        %v337 = vshrl.u32 %v336, 7
        %v338 = vsub.s32 3, %v337
        %v339 = vrot.slane %v329, %v338
        %v340 = vmul.f32 %v320, %v335
        %v341 = vmul.f32 %v320, %v339
        %v344 = vcombine.low %v340, %v341
        %v346 = vadd.f32 %v315, %v344
        %347 = vst [vmem:[%s204] sm:$0xff] %v346
        %s348 = sand.u32 %s112, 1
        %s349 = scalar_lea.sflag [#allocation4], %s348
        %s350 = sand.u32 %s112, 1
        %s351 = smul.addr %s350, 8
        %s352 = scalar_lea.vmem [#allocation5], %s351
        // Predicated region
        $region37: #{tpu_custom_call.1} parent=31 // pred_check
          %p353 = pneg %p122
        $region38: #{tpu_custom_call.1} parent=31 // pred_check_branch
          %355 = sbr.rel (%p353) target = $region40
        $region39: #{tpu_custom_call.1} parent=31 // pred_region
          %s356 = smul.u32 2, %s25
          %s358 = ssub.s32 128, 128
          %359 = vsyncadd %s349, %s358
          %s360 = smul.addr %s24, 2
          %s361 = sadd.s32 %s356, %s360
          %s362 = smul.addr %s361, 64
          %s363 = scalar_lea.hbm %s3, %s362
          %s365 = sshll.u32 %s352, 4
          %s366 = int_to_ptr.vmem [resolvable:$true] %s365
          %368 = dma.vmem_to_hbm [thread:$0]  %s366, 128, %s363, %s349
        $region40: #{tpu_custom_call.1} parent=31 // pred_fallthru
          _
      $region32: #{tpu_custom_call.1} parent=5 // pred_fallthru
        _
      %p369 = scmp.le.s32.totalorder 2, %s15
      // Predicated region
      $region41: #{tpu_custom_call.1} parent=5 // pred_check
        %p370 = pneg %p369
      $region42: #{tpu_custom_call.1} parent=5 // pred_check_branch
        %372 = sbr.rel (%p370) target = $region44
      $region43: #{tpu_custom_call.1} parent=5 // pred_region
        %s373 = ssub.s32 %s15, 2
        // Predicated region
        $region45: #{tpu_custom_call.1} parent=43 // pred_check
          %p374 = pneg %p128
        $region46: #{tpu_custom_call.1} parent=43 // pred_check_branch
          %376 = sbr.rel (%p374) target = $region48
        $region47: #{tpu_custom_call.1} parent=43 // pred_region
          %s377 = sand.u32 %s113, 1
          %s378 = scalar_lea.sflag [#allocation4], %s377
          %s379 = sand.u32 %s113, 1
          %s380 = smul.addr %s379, 8
          %s381 = scalar_lea.vmem [#allocation5], %s380
          %382 = dma.done %s378, 128
        $region48: #{tpu_custom_call.1} parent=43 // pred_fallthru
          _
      $region44: #{tpu_custom_call.1} parent=5 // pred_fallthru
        _
    $region6: #{tpu_custom_call.1} parent=1 // loop_footer
      %s19 = sadd.s32 1, %s15
    $region7: #{tpu_custom_call.1} parent=1 // loop_footer_branch
      %14 = sbr.rel target = $region3
    $region8: #{tpu_custom_call.1} parent=1 // loop_exit
      _
    %383 = vsyncpa [#allocation3], 1
    %s384 = scalar_lea.sflag [#allocation3], 1
    %385 = vsyncpa %s384, 1
    %386 = vsyncpa [#allocation4], 1
    %s387 = scalar_lea.sflag [#allocation4], 1
    %388 = vsyncpa %s387, 1

</llo_original>
